<compile_context>
chip_gen: v7x
topology: tpu7x:2x2x1
jax: 0.10.0
libtpu: 0.0.40
codegen_flags: <defaults>
</compile_context>

<pallas_src>
import jax
import jax.numpy as jnp
from jax.experimental import pallas as pl
from jax.experimental.pallas import tpu as pltpu

R1_W = 0.2                # module's self.r1_w
_LANES = 1024             # lane-dense slab width (8 vregs wide, multiple of 128)
_SUBLANES = 8
_TARGET_ROW_TILE = 1024   # 1024 rows x 1024 lanes x 4B = 4 MiB per f32 block
_NUM_CORES = 2            # megacore split (v7x); serializes harmlessly on 1-TC chips


def _round_up(x: int, m: int) -> int:
    return (x + m - 1) // m * m


def _r1_sumsq_kernel(g_ref, acc_ref):
    """Accumulate per-lane partial sums of squared gradients.

    g_ref:   (row_tile, LANES) tile of the flattened gradient (any float dtype)
    acc_ref: (8, LANES) f32 accumulator (resident output block per core)
    """
    k = pl.program_id(1)   # reduction axis

    @pl.when(k == 0)
    def _():
        acc_ref[...] = jnp.zeros_like(acc_ref)

    g = g_ref[...].astype(jnp.float32)           # cast in-kernel (bf16 stays bf16 in HBM)
    g2 = g * g
    # Fold the row tile onto the (8, LANES) accumulator: layout-preserving
    # reshape + vector adds only (pure VPU, no per-step XLU reduce, no serial
    # scalar RMW chain).  The single cross-lane reduce happens in the wrapper.
    acc_ref[...] += jnp.sum(g2.reshape(-1, _SUBLANES, g.shape[-1]), axis=0)


def r1_penalty_from_grad(grad_real: jax.Array) -> jax.Array:
    """Pallas implementation of  r1_w * grad.pow(2).view(B,-1).sum(1).mean()."""
    B = grad_real.shape[0]
    g = grad_real.reshape(-1)                    # sum(1).mean() == total_sum / B
    n = g.shape[0]

    raw_rows = pl.cdiv(n, _LANES)
    rows_per_core = pl.cdiv(raw_rows, _NUM_CORES)
    row_tile = min(_TARGET_ROW_TILE, _round_up(rows_per_core, _SUBLANES))
    rows = _round_up(raw_rows, _NUM_CORES * row_tile)
    k_steps = rows // (_NUM_CORES * row_tile)

    pad = rows * _LANES - n
    if pad:
        g = jnp.pad(g, (0, pad))                 # zero padding: no effect on sum of squares
    g2d = g.reshape(rows, _LANES)

    out_rows = _NUM_CORES * _SUBLANES
    itemsize = jnp.dtype(grad_real.dtype).itemsize
    cost = pl.CostEstimate(
        flops=2 * rows * _LANES,
        transcendentals=0,
        bytes_accessed=rows * _LANES * itemsize + out_rows * _LANES * 4,
    )

    partial = pl.pallas_call(
        _r1_sumsq_kernel,
        out_shape=jax.ShapeDtypeStruct((out_rows, _LANES), jnp.float32),
        grid_spec=pltpu.PrefetchScalarGridSpec(
            num_scalar_prefetch=0,
            grid=(_NUM_CORES, k_steps),
            in_specs=[pl.BlockSpec((row_tile, _LANES),
                                   lambda c, k: (c * k_steps + k, 0))],
            out_specs=pl.BlockSpec((_SUBLANES, _LANES),
                                   lambda c, k: (c, 0)),
        ),
        compiler_params=pltpu.CompilerParams(
            dimension_semantics=("parallel", "arbitrary")),
        cost_estimate=cost,
    )(g2d)

    # Tiny final cross-lane reduce (NC*8*1024 f32) + scaling in XLA.
    return (jnp.float32(R1_W) / jnp.float32(B)) * jnp.sum(partial)


def r1_forward(disc_fn, real_sample: jax.Array) -> jax.Array:
    """Full R1.forward: grad of disc_fn(real_sample).sum() w.r.t. real_sample,
    then the Pallas squared-norm reduction."""
    # TODO(synk): torch.autograd.grad has no in-kernel Pallas equivalent; the
    # differentiation is done with jax.grad here (glue), reduction is in Pallas.
    grad_real = jax.grad(lambda x: jnp.sum(disc_fn(x)))(real_sample)
    return r1_penalty_from_grad(grad_real)


if __name__ == "__main__":
    key = jax.random.PRNGKey(0)
    B, C, H, W = 2, 4, 16, 16
    k_x, k_w = jax.random.split(key)

    real_sample = jax.random.normal(k_x, (B, C, H, W), dtype=jnp.float32)

    # Small deterministic synthetic discriminator: x -> tanh(x_flat @ w) per sample.
    F_dim = C * H * W
    w = jax.random.normal(k_w, (F_dim, 1), dtype=jnp.float32) * 0.05

    def disc_fn(x):
        return jnp.tanh(x.reshape(x.shape[0], -1) @ w)   # [B, 1] "prediction_real"

    loss = r1_forward(disc_fn, real_sample)
    loss = jax.block_until_ready(loss)

    # Reference check (pure JAX) of the kernel's reduction semantics.
    grad_ref = jax.grad(lambda x: jnp.sum(disc_fn(x)))(real_sample)
    ref = R1_W * jnp.mean(jnp.sum(jnp.square(grad_ref).reshape(B, -1), axis=1))
    assert jnp.allclose(loss, ref, rtol=1e-5, atol=1e-6), (loss, ref)

    print("KERNEL_OK")
</pallas_src>

<mosaic_0001>
module attributes {stable_mosaic.version = 11 : i64} {
  func.func @_r1_sumsq_kernel(%arg0: i32, %arg1: i32, %arg2: memref<8x1024xf32, #tpu.memory_space<vmem>>, %arg3: memref<8x1024xf32, #tpu.memory_space<vmem>>) attributes {dimension_semantics = [#tpu.dimension_semantics<parallel>, #tpu.dimension_semantics<arbitrary>], iteration_bounds = array<i64: 2, 1>, scalar_prefetch = 0 : i64, scratch_operands = 0 : i64, tpu.core_type = #tpu.core_type<tc>, window_params = [{transform_indices = @transform_0, window_bounds = array<i64: 8, 1024>}, {transform_indices = @transform_1, window_bounds = array<i64: 8, 1024>}]} {
    %c0_i32 = arith.constant 0 : i32
    %0 = arith.cmpi eq, %arg1, %c0_i32 : i32
    %1 = arith.extui %0 : i1 to i32
    %c0_i32_0 = arith.constant 0 : i32
    %2 = arith.cmpi ne, %1, %c0_i32_0 : i32
    scf.if %2 {
      %cst_6 = arith.constant 0.000000e+00 : f32
      %10 = vector.broadcast %cst_6 : f32 to vector<8x1024xf32>
      %c0_7 = arith.constant 0 : index
      %c0_8 = arith.constant 0 : index
      %11 = vector.load %arg3[%c0_7, %c0_8] : memref<8x1024xf32, #tpu.memory_space<vmem>>, vector<8x1024xf32>
      tpu.vector_store %arg3[%c0_7, %c0_8], %10 {strides = array<i32>} : memref<8x1024xf32, #tpu.memory_space<vmem>>, vector<8x1024xf32>,
    } else {
    }
    %c0 = arith.constant 0 : index
    %c0_1 = arith.constant 0 : index
    %3 = vector.load %arg2[%c0, %c0_1] : memref<8x1024xf32, #tpu.memory_space<vmem>>, vector<8x1024xf32>
    %4 = arith.mulf %3, %3 : vector<8x1024xf32>
    %c0_2 = arith.constant 0 : index
    %c0_3 = arith.constant 0 : index
    %5 = vector.load %arg3[%c0_2, %c0_3] : memref<8x1024xf32, #tpu.memory_space<vmem>>, vector<8x1024xf32>
    %6 = vector.shape_cast %4 : vector<8x1024xf32> to vector<1x8x1024xf32>
    %cst = arith.constant dense<0.000000e+00> : vector<8x1024xf32>
    %7 = vector.multi_reduction <add>, %6, %cst [0] : vector<1x8x1024xf32> to vector<8x1024xf32>
    %8 = arith.addf %5, %7 : vector<8x1024xf32>
    %c0_4 = arith.constant 0 : index
    %c0_5 = arith.constant 0 : index
    %9 = vector.load %arg3[%c0_4, %c0_5] : memref<8x1024xf32, #tpu.memory_space<vmem>>, vector<8x1024xf32>
    tpu.vector_store %arg3[%c0_4, %c0_5], %8 {strides = array<i32>} : memref<8x1024xf32, #tpu.memory_space<vmem>>, vector<8x1024xf32>,
    return
  }
  func.func @transform_0(%arg0: i32, %arg1: i32) -> (i32, i32) {
    %c1_i32 = arith.constant 1 : i32
    %0 = arith.muli %arg0, %c1_i32 : i32
    %1 = arith.addi %0, %arg1 : i32
    %c0_i32 = arith.constant 0 : i32
    %c0_i32_0 = arith.constant 0 : i32
    return %1, %c0_i32 : i32, i32
  }
  func.func @transform_1(%arg0: i32, %arg1: i32) -> (i32, i32) {
    %c0_i32 = arith.constant 0 : i32
    %c0_i32_0 = arith.constant 0 : i32
    return %arg0, %c0_i32 : i32, i32
  }
}

</mosaic_0001>

<llo_original>
// kernel: tpu_custom_call.1
$region0: #{tpu_custom_call.1}
  #allocation0 [shape = 'u32[]', space=smem, size = 0x4, offset = 0x4, fixed_abs, tag = 'smem constant byte address 0x4 - core index']
  #allocation1 [shape = 'u32[144,128]{1,0:T(1,128)}', space=vmem, size = 0x12000, scoped, tag = 'internal scratch']
  %s0 = inlined_call_operand.hbm [shape: f32[16,1024], index: 0, kind: input, shape index: {}]
  %s1 = inlined_call_operand.hbm [shape: f32[16,1024], index: 1, kind: output, shape index: {}]
  %s2 = sld [smem:[#allocation0]]
  $region45: #{tpu_custom_call.1} parent=0
    _
  %s4 = ssub.s32 1, %s2
  %s5 = scalar_select 0, %s4, %s2
  $region1: #{tpu_custom_call.1} parent=0
    #allocation2 [shape = 'u8[65536]{0}', space=vmem, size = 0x10000, scoped, tag = 'input window, operand 0']
    #allocation3 [shape = 's32[2]{0}', space=sflag, size = 0x8, scoped, tag = 'scoped memory for tpu_custom_call.1']
    #allocation4 [shape = 's32[2]{0}', space=sflag, size = 0x8, scoped, tag = 'scoped memory for tpu_custom_call.1']
    #allocation5 [shape = 'u8[65536]{0}', space=vmem, size = 0x10000, scoped, tag = 'output window, operand 0']
    %6 = vsyncpa [#allocation3], 0
    %s7 = scalar_lea.sflag [#allocation3], 1
    %8 = vsyncpa %s7, 0
    %9 = vsyncpa [#allocation4], 0
    %s10 = scalar_lea.sflag [#allocation4], 1
    %11 = vsyncpa %s10, 0
    loop: start=0, step=1, limit=4
    $region2: #{tpu_custom_call.1} parent=1 // loop_pre_header
      _
    $region3: #{tpu_custom_call.1} parent=1 // loop_header
      %s13 = sphi 0, %s17
      %p14 = scmp.ge.s32.totalorder %s13, 4
      %s20 = sphi 0, %s32
      %s21 = sphi 0, %s28
      %s22 = sphi 0, %s20
      %s23 = sphi 0, %s21
      %s24 = sphi 0, %s22
      %s25 = sphi 0, %s23
      %s37 = sphi 0, %s39
      %s40 = sphi 0, %s37
      %s41 = sphi 0, %s40
      %s57 = sphi 0, %s41
      %s63 = sphi 0, %s65
      %s66 = sphi 0, %s63
      %s67 = sphi 0, %s66
      %s83 = sphi 0, %s67
    $region4: #{tpu_custom_call.1} parent=1 // loop_header_branch
      %16 = sbr.rel (%p14) target = $region8
    $region5: #{tpu_custom_call.1} parent=1 // loop_body
      %s18 = ssub.s32 %s13, 1
      %s19 = ssub.s32 %s13, 2
      %s26 = sadd.s32 1, %s21
      %p27 = scmp.ge.s32.totalorder %s26, 1
      %s28 = scalar_select %p27, 0, %s26
      %s29 = sadd.s32 1, %s20
      %s30 = scalar_select %p27, %s29, %s20
      %p31 = scmp.ge.s32.totalorder %s30, 2
      %s32 = scalar_select %p31, 0, %s30
      %s33 = sadd.s32 %s20, %s21
      %s34 = sadd.s32 %s32, %s28
      %s35 = ssub.s32 %s33, %s34
      %p36 = scmp.eq.s32.totalorder %s35, 0
      %s38 = sadd.s32 %s37, 1
      %s39 = scalar_select %p36, %s37, %s38
      %p42 = pneg %p36
      %p43 = scmp.eq.s32.totalorder %s13, 1
      %p44 = por %p42, %p43
      %p45 = scmp.ne.s32.totalorder %s37, %s40
      %p46 = scmp.eq.s32.totalorder %s13, 0
      %p47 = por %p45, %p46
      %p48 = scmp.ne.s32.totalorder %s37, %s40
      %p49 = scmp.eq.s32.totalorder %s18, 1
      %p50 = por %p48, %p49
      %p51 = scmp.ne.s32.totalorder %s40, %s41
      %p52 = scmp.eq.s32.totalorder %s18, 0
      %p53 = por %p51, %p52
      %p54 = scmp.ne.s32.totalorder %s40, %s41
      %p55 = scmp.eq.s32.totalorder %s19, 1
      %p56 = por %p54, %p55
      %p58 = scmp.ne.s32.totalorder %s41, %s57
      %p59 = scmp.eq.s32.totalorder %s19, 0
      %p60 = por %p58, %p59
      %s61 = ssub.s32 %s20, %s32
      %p62 = scmp.eq.s32.totalorder %s61, 0
      %s64 = sadd.s32 %s63, 1
      %s65 = scalar_select %p62, %s63, %s64
      %p68 = pneg %p62
      %p69 = scmp.eq.s32.totalorder %s13, 1
      %p70 = por %p68, %p69
      %p71 = scmp.ne.s32.totalorder %s63, %s66
      %p72 = scmp.eq.s32.totalorder %s13, 0
      %p73 = por %p71, %p72
      %p74 = scmp.ne.s32.totalorder %s63, %s66
      %p75 = scmp.eq.s32.totalorder %s18, 1
      %p76 = por %p74, %p75
      %p77 = scmp.ne.s32.totalorder %s66, %s67
      %p78 = scmp.eq.s32.totalorder %s18, 0
      %p79 = por %p77, %p78
      %p80 = scmp.ne.s32.totalorder %s66, %s67
      %p81 = scmp.eq.s32.totalorder %s19, 1
      %p82 = por %p80, %p81
      %p84 = scmp.ne.s32.totalorder %s67, %s83
      %p85 = scmp.eq.s32.totalorder %s19, 0
      %p86 = por %p84, %p85
      %p87 = scmp.le.s32.totalorder 1, %s13
      %p88 = scmp.lt.s32.totalorder %s13, 3
      %p89 = pnand %p87, %p88
      %p90 = pneg %p89
      // Predicated region
      $region9: #{tpu_custom_call.1} parent=5 // pred_check
        _
      $region10: #{tpu_custom_call.1} parent=5 // pred_check_branch
        %92 = sbr.rel (%p89) target = $region12
      $region11: #{tpu_custom_call.1} parent=5 // pred_region
        %s93 = ssub.s32 %s13, 1
      $region12: #{tpu_custom_call.1} parent=5 // pred_fallthru
        _
      %p94 = scmp.lt.s32.totalorder %s13, 2
      // Predicated region
      $region13: #{tpu_custom_call.1} parent=5 // pred_check
        %p95 = pneg %p94
      $region14: #{tpu_custom_call.1} parent=5 // pred_check_branch
        %97 = sbr.rel (%p95) target = $region16
      $region15: #{tpu_custom_call.1} parent=5 // pred_region
        // Predicated region
        $region17: #{tpu_custom_call.1} parent=15 // pred_check
          %p98 = pneg %p47
        $region18: #{tpu_custom_call.1} parent=15 // pred_check_branch
          %100 = sbr.rel (%p98) target = $region20
        $region19: #{tpu_custom_call.1} parent=15 // pred_region
          %s101 = sand.u32 %s37, 1
          %s102 = scalar_lea.sflag [#allocation3], %s101
          %s103 = sand.u32 %s37, 1
          %s104 = smul.addr %s103, 64
          %s105 = scalar_lea.vmem [#allocation2], %s104
          %s106 = sadd.s32 %s20, %s21
          %s108 = ssub.s32 1024, 1024
          %109 = vsyncadd %s102, %s108
          %s110 = smul.addr %s106, 8
          %s111 = smul.addr %s110, 128
          %s112 = scalar_lea.hbm %s0, %s111
          %s114 = sshll.u32 %s105, 4
          %s115 = int_to_ptr.vmem [resolvable:$true] %s114
          %117 = dma.hbm_to_vmem [thread:$0]  %s112, 1024, %s115, %s102
        $region20: #{tpu_custom_call.1} parent=15 // pred_fallthru
          _
      $region16: #{tpu_custom_call.1} parent=5 // pred_fallthru
        _
      %p118 = scmp.le.s32.totalorder 1, %s13
      %p119 = scmp.lt.s32.totalorder %s13, 3
      %p120 = pnand %p118, %p119
      %p121 = pneg %p120
      // Predicated region
      $region21: #{tpu_custom_call.1} parent=5 // pred_check
        _
      $region22: #{tpu_custom_call.1} parent=5 // pred_check_branch
        %123 = sbr.rel (%p120) target = $region24
      $region23: #{tpu_custom_call.1} parent=5 // pred_region
        %s124 = ssub.s32 %s13, 1
        %s125 = sand.u32 %s40, 1
        %s126 = scalar_lea.sflag [#allocation3], %s125
        %s127 = sand.u32 %s40, 1
        %s128 = smul.addr %s127, 64
        %s129 = scalar_lea.vmem [#allocation2], %s128
        // Predicated region
        $region25: #{tpu_custom_call.1} parent=23 // pred_check
          %p130 = pneg %p53
        $region26: #{tpu_custom_call.1} parent=23 // pred_check_branch
          %132 = sbr.rel (%p130) target = $region28
        $region27: #{tpu_custom_call.1} parent=23 // pred_region
          %133 = dma.done %s126, 1024
        $region28: #{tpu_custom_call.1} parent=23 // pred_fallthru
          _
        %s134 = sand.u32 %s40, 1
        %s135 = scalar_lea.sflag [#allocation3], %s134
        %s136 = sand.u32 %s40, 1
        %s137 = smul.addr %s136, 64
        %s138 = scalar_lea.vmem [#allocation2], %s137
        %p139 = pneg %p53
        %p140 = pneg %p50
        %p141 = pneg %p79
        %p142 = pneg %p76
        %s143 = sand.u32 %s66, 1
        %s144 = scalar_lea.sflag [#allocation4], %s143
        %s145 = sand.u32 %s66, 1
        %s146 = smul.addr %s145, 64
        %s147 = scalar_lea.vmem [#allocation5], %s146
        %s148 = sadd.s32 %s22, %s23
        %p149 = scmp.eq.s32.totalorder %s23, 0
        // Predicated region
        $region29: #{tpu_custom_call.1} parent=23 // pred_check
          %p150 = pneg %p149
        $region30: #{tpu_custom_call.1} parent=23 // pred_check_branch
          %152 = sbr.rel (%p150) target = $region32
        $region31: #{tpu_custom_call.1} parent=23 // pred_region
          %153 = vst [vmem:[%s147] sm:$0xff] 0.0
          %154 = vst [vmem:[%s147 + $0x8] sm:$0xff] 0.0
          %155 = vst [vmem:[%s147 + $0x10] sm:$0xff] 0.0
          %156 = vst [vmem:[%s147 + $0x18] sm:$0xff] 0.0
          %157 = vst [vmem:[%s147 + $0x20] sm:$0xff] 0.0
          %158 = vst [vmem:[%s147 + $0x28] sm:$0xff] 0.0
          %159 = vst [vmem:[%s147 + $0x30] sm:$0xff] 0.0
          %160 = vst [vmem:[%s147 + $0x38] sm:$0xff] 0.0
        $region32: #{tpu_custom_call.1} parent=23 // pred_fallthru
          _
        %v161 = vld [vmem:[%s129] sm:$0xff]
        %v162 = vld [vmem:[%s129 + $0x8] sm:$0xff]
        %v163 = vld [vmem:[%s129 + $0x10] sm:$0xff]
        %v164 = vld [vmem:[%s129 + $0x18] sm:$0xff]
        %v165 = vld [vmem:[%s129 + $0x20] sm:$0xff]
        %v166 = vld [vmem:[%s129 + $0x28] sm:$0xff]
        %v167 = vld [vmem:[%s129 + $0x30] sm:$0xff]
        %v168 = vld [vmem:[%s129 + $0x38] sm:$0xff]
        %v169 = vmul.f32 %v161, %v161
        %v170 = vmul.f32 %v162, %v162
        %v171 = vmul.f32 %v163, %v163
        %v172 = vmul.f32 %v164, %v164
        %v173 = vmul.f32 %v165, %v165
        %v174 = vmul.f32 %v166, %v166
        %v175 = vmul.f32 %v167, %v167
        %v176 = vmul.f32 %v168, %v168
        %v177 = vld [vmem:[%s147] sm:$0xff]
        %v178 = vld [vmem:[%s147 + $0x8] sm:$0xff]
        %v179 = vld [vmem:[%s147 + $0x10] sm:$0xff]
        %v180 = vld [vmem:[%s147 + $0x18] sm:$0xff]
        %v181 = vld [vmem:[%s147 + $0x20] sm:$0xff]
        %v182 = vld [vmem:[%s147 + $0x28] sm:$0xff]
        %v183 = vld [vmem:[%s147 + $0x30] sm:$0xff]
        %v184 = vld [vmem:[%s147 + $0x38] sm:$0xff]
        %v185 = vadd.f32 %v169, 0.0
        %v186 = vadd.f32 %v170, 0.0
        %v187 = vadd.f32 %v171, 0.0
        %v188 = vadd.f32 %v172, 0.0
        %v189 = vadd.f32 %v173, 0.0
        %v190 = vadd.f32 %v174, 0.0
        %v191 = vadd.f32 %v175, 0.0
        %v192 = vadd.f32 %v176, 0.0
        %v193 = vadd.f32 %v177, %v185
        %v194 = vadd.f32 %v178, %v186
        %v195 = vadd.f32 %v179, %v187
        %v196 = vadd.f32 %v180, %v188
        %v197 = vadd.f32 %v181, %v189
        %v198 = vadd.f32 %v182, %v190
        %v199 = vadd.f32 %v183, %v191
        %v200 = vadd.f32 %v184, %v192
        %201 = vst [vmem:[%s147] sm:$0xff] %v193
        %202 = vst [vmem:[%s147 + $0x8] sm:$0xff] %v194
        %203 = vst [vmem:[%s147 + $0x10] sm:$0xff] %v195
        %204 = vst [vmem:[%s147 + $0x18] sm:$0xff] %v196
        %205 = vst [vmem:[%s147 + $0x20] sm:$0xff] %v197
        %206 = vst [vmem:[%s147 + $0x28] sm:$0xff] %v198
        %207 = vst [vmem:[%s147 + $0x30] sm:$0xff] %v199
        %208 = vst [vmem:[%s147 + $0x38] sm:$0xff] %v200
        %s209 = sand.u32 %s66, 1
        %s210 = scalar_lea.sflag [#allocation4], %s209
        %s211 = sand.u32 %s66, 1
        %s212 = smul.addr %s211, 64
        %s213 = scalar_lea.vmem [#allocation5], %s212
        // Predicated region
        $region33: #{tpu_custom_call.1} parent=23 // pred_check
          %p214 = pneg %p76
        $region34: #{tpu_custom_call.1} parent=23 // pred_check_branch
          %216 = sbr.rel (%p214) target = $region36
        $region35: #{tpu_custom_call.1} parent=23 // pred_region
          %s218 = ssub.s32 1024, 1024
          %219 = vsyncadd %s210, %s218
          %s220 = smul.addr %s22, 8
          %s221 = smul.addr %s220, 128
          %s222 = scalar_lea.hbm %s1, %s221
          %s224 = sshll.u32 %s213, 4
          %s225 = int_to_ptr.vmem [resolvable:$true] %s224
          %227 = dma.vmem_to_hbm [thread:$0]  %s225, 1024, %s222, %s210
        $region36: #{tpu_custom_call.1} parent=23 // pred_fallthru
          _
      $region24: #{tpu_custom_call.1} parent=5 // pred_fallthru
        _
      %p228 = scmp.le.s32.totalorder 2, %s13
      // Predicated region
      $region37: #{tpu_custom_call.1} parent=5 // pred_check
        %p229 = pneg %p228
      $region38: #{tpu_custom_call.1} parent=5 // pred_check_branch
        %231 = sbr.rel (%p229) target = $region40
      $region39: #{tpu_custom_call.1} parent=5 // pred_region
        %s232 = ssub.s32 %s13, 2
        // Predicated region
        $region41: #{tpu_custom_call.1} parent=39 // pred_check
          %p233 = pneg %p82
        $region42: #{tpu_custom_call.1} parent=39 // pred_check_branch
          %235 = sbr.rel (%p233) target = $region44
        $region43: #{tpu_custom_call.1} parent=39 // pred_region
          %s236 = sand.u32 %s67, 1
          %s237 = scalar_lea.sflag [#allocation4], %s236
          %s238 = sand.u32 %s67, 1
          %s239 = smul.addr %s238, 64
          %s240 = scalar_lea.vmem [#allocation5], %s239
          %241 = dma.done %s237, 1024
        $region44: #{tpu_custom_call.1} parent=39 // pred_fallthru
          _
      $region40: #{tpu_custom_call.1} parent=5 // pred_fallthru
        _
    $region6: #{tpu_custom_call.1} parent=1 // loop_footer
      %s17 = sadd.s32 1, %s13
    $region7: #{tpu_custom_call.1} parent=1 // loop_footer_branch
      %12 = sbr.rel target = $region3
    $region8: #{tpu_custom_call.1} parent=1 // loop_exit
      _
    %242 = vsyncpa [#allocation3], 1
    %s243 = scalar_lea.sflag [#allocation3], 1
    %244 = vsyncpa %s243, 1
    %245 = vsyncpa [#allocation4], 1
    %s246 = scalar_lea.sflag [#allocation4], 1
    %247 = vsyncpa %s246, 1

</llo_original>
